<compile_context>
chip_gen: v6e
topology: v6e:2x2x1
jax: 0.10.0
libtpu: 0.0.40
codegen_flags: <defaults>
</compile_context>

<pallas_src>
import jax
import jax.numpy as jnp
from jax.experimental import pallas as pl
from jax.experimental.pallas import tpu as pltpu


# ----------------------------- helpers --------------------------------------

def _round_up(v, m):
    return ((v + m - 1) // m) * m


def _vmem_budget_bytes():
    """Per-kernel VMEM budget used for tile sizing (generation aware)."""
    try:  # trace-time hardware query; fall back if unavailable
        info = pltpu.get_tpu_info()
        phys = getattr(info, "vmem_capacity_bytes", None)
        if phys:
            return int(phys * 0.35)       # ~22 MiB on v7x, ~45 MiB on v5e/v6e
    except Exception:
        pass
    return 24 * 1024 * 1024               # conservative: fits every generation


# ----------------------------- kernels --------------------------------------

def _predict_kernel(x_ref, w_ref, b_ref, o_ref):
    # y = x @ W + b for one row tile; W is pre-transposed to [F, C].
    y = jnp.dot(x_ref[...], w_ref[...], preferred_element_type=jnp.float32)
    o_ref[...] = (y + b_ref[...]).astype(o_ref.dtype)          # f32 epilogue


def _predict_kernel_ktiled(x_ref, w_ref, b_ref, o_ref, acc_ref):
    # Large-F variant: feature (K) dim tiled, f32 accumulator resident in VMEM.
    k = pl.program_id(1)

    @pl.when(k == 0)
    def _init():
        acc_ref[...] = jnp.zeros_like(acc_ref)

    acc_ref[...] += jnp.dot(x_ref[...], w_ref[...],
                            preferred_element_type=jnp.float32)

    @pl.when(k == pl.num_programs(1) - 1)
    def _finalize():
        o_ref[...] = (acc_ref[...] + b_ref[...]).astype(o_ref.dtype)


# ----------------------------- model prep (one-time) ------------------------

def prepare_skl_linear(coef, intercept, *, stream_dtype=jnp.float32,
                       max_tile_n=2048, vmem_budget_bytes=None):
    """One-time "model load": transpose / pad / cast the fitted parameters and
    derive the tiling. Returns a params dict consumed by skl_linear_predict."""
    coef_arr = jnp.asarray(coef)
    single_output = coef_arr.ndim == 1               # 1-D coef_ -> single target
    coef_arr = jnp.atleast_2d(coef_arr).astype(jnp.float32)          # [C, F]
    intercept_arr = jnp.atleast_1d(jnp.asarray(intercept)).astype(jnp.float32)
    C, F = coef_arr.shape
    assert intercept_arr.shape == (C,), "intercept / coef shape mismatch"

    stream_dtype = jnp.dtype(stream_dtype)
    in_bytes = stream_dtype.itemsize
    row_align = max(8, 32 // in_bytes)               # f32:8, bf16:16, int8/fp8:32
    budget = vmem_budget_bytes or _vmem_budget_bytes()
    C_lane = _round_up(C, 128)                       # VMEM lane-layout footprint

    # --- K (feature) tiling: only when resident W won't fit its budget share --
    w_share = budget // 3                            # W (2 buffers) gets <= 1/3
    if 2 * F * C_lane * in_bytes <= w_share:
        tile_k, k_tiled = F, False
    else:
        tile_k = max(128, (w_share // (2 * C_lane * in_bytes)) // 128 * 128)
        tile_k = min(tile_k, _round_up(F, 128))
        k_tiled = True
    F_pad = _round_up(F, tile_k) if k_tiled else F

    # --- row tile: as large as the remaining budget allows ------------------
    w_bytes = 2 * tile_k * C_lane * in_bytes
    per_row = (2 * tile_k * in_bytes                 # double-buffered x stream
               + 2 * C_lane * 4                      # double-buffered f32 output
               + (C_lane * 4 if k_tiled else 0))     # accumulator scratch
    tile_n = max(row_align, (budget - w_bytes) // per_row)
    tile_n = min(tile_n, max_tile_n)
    tile_n = max(row_align, (tile_n // row_align) * row_align)

    # Weights pre-transposed to [F_pad, C]; zero rows beyond F so boundary K
    # blocks contribute exact zeros. Bias stays f32 for the VPU epilogue.
    w_fc = jnp.zeros((F_pad, C), jnp.float32).at[:F, :].set(coef_arr.T)
    w_fc = w_fc.astype(stream_dtype)
    b = intercept_arr.reshape(1, C)

    vmem_limit = int(min(max(2 * budget, 48 * 1024 * 1024), 100 * 1024 * 1024))

    return dict(w=w_fc, b=b, F=F, F_pad=F_pad, C=C,
                tile_n=int(tile_n), tile_k=int(tile_k), k_tiled=bool(k_tiled),
                row_align=int(row_align), stream_dtype=stream_dtype,
                vmem_limit=vmem_limit, single_output=bool(single_output))


# ----------------------------- predict (hot path) ---------------------------

def skl_linear_predict(params, x):
    """Pallas equivalent of sklearn LinearRegression.predict for 2-D inputs."""
    w, b = params["w"], params["b"]
    F, F_pad, C = params["F"], params["F_pad"], params["C"]
    tile_k, k_tiled = params["tile_k"], params["k_tiled"]
    stream_dtype = params["stream_dtype"]
    row_align = params["row_align"]

    x = jnp.asarray(x)
    assert x.ndim == 2 and x.shape[1] == F, "expected x of shape [N, F]"
    if x.dtype != stream_dtype:                      # skip cast when already right
        x = x.astype(stream_dtype)

    N = x.shape[0]
    tile_n = min(params["tile_n"], _round_up(max(N, 1), row_align))
    grid_n = pl.cdiv(N, tile_n)

    cost = pl.CostEstimate(
        flops=2 * N * F * C,
        transcendentals=0,
        bytes_accessed=(stream_dtype.itemsize * (N * F + F_pad * C)
                        + 4 * (N * C + C)),
    )

    if not k_tiled:
        grid_spec = pltpu.PrefetchScalarGridSpec(
            num_scalar_prefetch=0,
            grid=(grid_n,),
            in_specs=[
                pl.BlockSpec((tile_n, F), lambda i: (i, 0)),   # streamed x tiles
                pl.BlockSpec((F, C), lambda i: (0, 0)),        # resident W
                pl.BlockSpec((1, C), lambda i: (0, 0)),        # resident bias
            ],
            out_specs=pl.BlockSpec((tile_n, C), lambda i: (i, 0)),
        )
        kernel = _predict_kernel
        dim_sem = ("parallel",)
    else:
        if F_pad != F:
            # One-off zero pad of the feature dim (large-F, compute-bound case)
            # so boundary K blocks multiply exact zeros.
            x = jnp.pad(x, ((0, 0), (0, F_pad - F)))
        num_k = F_pad // tile_k
        grid_spec = pltpu.PrefetchScalarGridSpec(
            num_scalar_prefetch=0,
            grid=(grid_n, num_k),
            in_specs=[
                pl.BlockSpec((tile_n, tile_k), lambda i, k: (i, k)),
                pl.BlockSpec((tile_k, C), lambda i, k: (k, 0)),
                pl.BlockSpec((1, C), lambda i, k: (0, 0)),
            ],
            out_specs=pl.BlockSpec((tile_n, C), lambda i, k: (i, 0)),
            scratch_shapes=[pltpu.VMEM((tile_n, C), jnp.float32)],
        )
        kernel = _predict_kernel_ktiled
        dim_sem = ("parallel", "arbitrary")          # never parallel on K

    y = pl.pallas_call(
        kernel,
        out_shape=jax.ShapeDtypeStruct((N, C), jnp.float32),
        grid_spec=grid_spec,
        compiler_params=pltpu.CompilerParams(
            dimension_semantics=dim_sem,
            vmem_limit_bytes=params["vmem_limit"],
        ),
        cost_estimate=cost,
    )(x, w, b)

    return y[:, 0] if params["single_output"] else y


# ----------------------------- demo / check ---------------------------------

if __name__ == "__main__":
    # Small deterministic problem: 8 samples, 32 features, 4 regression targets.
    key = jax.random.PRNGKey(0)
    kx, kw, kb = jax.random.split(key, 3)
    N, F, C = 8, 32, 4

    x = jax.random.normal(kx, (N, F), dtype=jnp.float32)
    coef = jax.random.normal(kw, (C, F), dtype=jnp.float32) * 0.1   # "fitted" coef_
    intercept = jax.random.normal(kb, (C,), dtype=jnp.float32)      # "fitted" intercept_

    # Reference (pure JAX, mirrors sklearn LinearRegression.predict).
    y_ref = x @ coef.T + intercept[None, :]

    # f32 streaming path (default) — tight check.
    params_f32 = prepare_skl_linear(coef, intercept, stream_dtype=jnp.float32)
    y_f32 = jax.block_until_ready(skl_linear_predict(params_f32, x))
    assert y_f32.shape == (N, C)
    assert jnp.allclose(y_f32, y_ref, atol=1e-5, rtol=1e-5), "f32 mismatch vs reference"

    # bf16 streaming path (halves HBM read on v6e/v7x) — loosened tolerance.
    params_bf16 = prepare_skl_linear(coef, intercept, stream_dtype=jnp.bfloat16)
    y_bf16 = jax.block_until_ready(skl_linear_predict(params_bf16, x))
    assert y_bf16.shape == (N, C)
    assert jnp.allclose(y_bf16, y_ref, atol=5e-2, rtol=5e-2), "bf16 mismatch vs reference"

    print("KERNEL_OK")
</pallas_src>

<mosaic_0001>
module attributes {stable_mosaic.version = 11 : i64} {
  func.func @_predict_kernel(%arg0: i32, %arg1: memref<8x32xf32, #tpu.memory_space<vmem>>, %arg2: memref<32x4xf32, #tpu.memory_space<vmem>>, %arg3: memref<1x4xf32, #tpu.memory_space<vmem>>, %arg4: memref<8x4xf32, #tpu.memory_space<vmem>>) attributes {dimension_semantics = [#tpu.dimension_semantics<parallel>], iteration_bounds = array<i64: 1>, scalar_prefetch = 0 : i64, scratch_operands = 0 : i64, tpu.core_type = #tpu.core_type<tc>, window_params = [{transform_indices = @transform_0, window_bounds = array<i64: 8, 32>}, {pipeline_mode = #tpu.pipeline_mode<synchronous>, transform_indices = @transform_1, window_bounds = array<i64: 32, 4>}, {pipeline_mode = #tpu.pipeline_mode<synchronous>, transform_indices = @transform_2, window_bounds = array<i64: 1, 4>}, {transform_indices = @transform_3, window_bounds = array<i64: 8, 4>}]} {
    %c0 = arith.constant 0 : index
    %c0_0 = arith.constant 0 : index
    %0 = vector.load %arg1[%c0, %c0_0] : memref<8x32xf32, #tpu.memory_space<vmem>>, vector<8x32xf32>
    %c0_1 = arith.constant 0 : index
    %c0_2 = arith.constant 0 : index
    %1 = vector.load %arg2[%c0_1, %c0_2] : memref<32x4xf32, #tpu.memory_space<vmem>>, vector<32x4xf32>
    %cst = arith.constant dense<0.000000e+00> : vector<8x4xf32>
    %2 = tpu.matmul %0, %1, %cst {dimension_numbers = #tpu.dot_dimension_numbers<[1], [0], [0], [1], [0, 0, 1, 1], [], []>} : vector<8x32xf32>, vector<32x4xf32>, vector<8x4xf32> -> vector<8x4xf32>
    %c0_3 = arith.constant 0 : index
    %c0_4 = arith.constant 0 : index
    %3 = vector.load %arg3[%c0_3, %c0_4] : memref<1x4xf32, #tpu.memory_space<vmem>>, vector<1x4xf32>
    %4 = vector.broadcast %3 : vector<1x4xf32> to vector<8x4xf32>
    %5 = arith.addf %2, %4 : vector<8x4xf32>
    %c0_5 = arith.constant 0 : index
    %c0_6 = arith.constant 0 : index
    %6 = vector.load %arg4[%c0_5, %c0_6] : memref<8x4xf32, #tpu.memory_space<vmem>>, vector<8x4xf32>
    tpu.vector_store %arg4[%c0_5, %c0_6], %5 {strides = array<i32>} : memref<8x4xf32, #tpu.memory_space<vmem>>, vector<8x4xf32>,
    return
  }
  func.func @transform_0(%arg0: i32) -> (i32, i32) {
    %c0_i32 = arith.constant 0 : i32
    %c0_i32_0 = arith.constant 0 : i32
    return %arg0, %c0_i32 : i32, i32
  }
  func.func @transform_1(%arg0: i32) -> (i32, i32) {
    %c0_i32 = arith.constant 0 : i32
    %c0_i32_0 = arith.constant 0 : i32
    %c0_i32_1 = arith.constant 0 : i32
    return %c0_i32, %c0_i32_0 : i32, i32
  }
  func.func @transform_2(%arg0: i32) -> (i32, i32) {
    %c0_i32 = arith.constant 0 : i32
    %c0_i32_0 = arith.constant 0 : i32
    %c0_i32_1 = arith.constant 0 : i32
    return %c0_i32, %c0_i32_0 : i32, i32
  }
  func.func @transform_3(%arg0: i32) -> (i32, i32) {
    %c0_i32 = arith.constant 0 : i32
    %c0_i32_0 = arith.constant 0 : i32
    return %arg0, %c0_i32 : i32, i32
  }
}

</mosaic_0001>

<llo_original>
// kernel: tpu_custom_call.1
$region0: #{tpu_custom_call.1}
  #allocation0 [shape = 'u32[]', space=smem, size = 0x4, offset = 0x4, fixed_abs, tag = 'smem constant byte address 0x4 - core index']
  #allocation1 [shape = 'u32[144,128]{1,0:T(1,128)}', space=vmem, size = 0x12000, scoped, tag = 'internal scratch']
  %s0 = inlined_call_operand.vmem [shape: f32[8,32], index: 0, kind: input, shape index: {}]
  %s1 = inlined_call_operand.vmem [shape: f32[32,4], index: 1, kind: input, shape index: {}]
  %s2 = inlined_call_operand.vmem [shape: f32[1,4], index: 2, kind: input, shape index: {}]
  %s3 = inlined_call_operand.vmem [shape: f32[8,4], index: 3, kind: output, shape index: {}]
  %s4 = sld [smem:[#allocation0]]
  $region22: #{tpu_custom_call.1} parent=0
    _
  %s6 = ssub.s32 1, %s4
  %s7 = scalar_select 0, %s6, %s4
  // Predicated region
  $region2: #{tpu_custom_call.1} parent=0 // pred_check
    _
  $region3: #{tpu_custom_call.1} parent=0 // pred_check_branch
    %9 = sbr.rel (0) target = $region5
  $region4: #{tpu_custom_call.1} parent=0 // pred_region
    _
  $region5: #{tpu_custom_call.1} parent=0 // pred_fallthru
    _
  // Predicated region
  $region6: #{tpu_custom_call.1} parent=0 // pred_check
    _
  $region7: #{tpu_custom_call.1} parent=0 // pred_check_branch
    %11 = sbr.rel (0) target = $region9
  $region8: #{tpu_custom_call.1} parent=0 // pred_region
    _
  $region9: #{tpu_custom_call.1} parent=0 // pred_fallthru
    _
  // Predicated region
  $region10: #{tpu_custom_call.1} parent=0 // pred_check
    _
  $region11: #{tpu_custom_call.1} parent=0 // pred_check_branch
    %13 = sbr.rel (0) target = $region13
  $region12: #{tpu_custom_call.1} parent=0 // pred_region
    _
  $region13: #{tpu_custom_call.1} parent=0 // pred_fallthru
    _
  %v14 = vld [vmem:[%s0] sm:$0xff]
  %v15 = vld [vmem:[%s1] sm:$0xff]
  %v16 = vld [vmem:[%s1 + $0x8] sm:$0xff]
  %v17 = vld [vmem:[%s1 + $0x10] sm:$0xff]
  %v18 = vld [vmem:[%s1 + $0x18] sm:$0xff]
  %v19 = vld [vmem:[%s2] sm:$0x1]
  %v21 = vlaneseq
  %v22 = vshrl.u32 %v21, 7
  %v23 = vsub.s32 0, %v22
  %v24 = vrot.slane %v19, %v23
  %vm26 = vcmask 261120
  %v28 = vsel %vm26, %v14, 0
  %30 = vmatprep.subr.mxu0 0.0
  %31 = vmatpush1.msra.mxu0 0.0
  %32 = vmatprep.subr.mxu0 0.0
  %33 = vmatpush1.msra.mxu0 0.0
  %34 = vmatprep.subr.mxu0 0.0
  %35 = vmatpush1.msra.mxu0 0.0
  %36 = vmatprep.subr.mxu0 0.0
  %37 = vmatpush1.msra.mxu0 0.0
  %38 = vmatprep.subr.mxu0 0.0
  %39 = vmatpush1.msra.mxu0 0.0
  %40 = vmatprep.subr.mxu0 0.0
  %41 = vmatpush1.msra.mxu0 0.0
  %42 = vmatprep.subr.mxu0 0.0
  %43 = vmatpush1.msra.mxu0 0.0
  %44 = vmatprep.subr.mxu0 0.0
  %45 = vmatpush1.msra.mxu0 0.0
  %46 = vmatprep.subr.mxu0 0.0
  %47 = vmatpush1.msra.mxu0 0.0
  %48 = vmatprep.subr.mxu0 0.0
  %49 = vmatpush1.msra.mxu0 0.0
  %50 = vmatprep.subr.mxu0 0.0
  %51 = vmatpush1.msra.mxu0 0.0
  %52 = vmatprep.subr.mxu0 0.0
  %53 = vmatpush1.msra.mxu0 0.0
  %54 = vmatprep.subr.mxu0 0.0
  %55 = vmatpush1.msra.mxu0 %v18
  %56 = vmatprep.subr.mxu0 0.0
  %57 = vmatpush1.msra.mxu0 %v17
  %58 = vmatprep.subr.mxu0 0.0
  %59 = vmatpush1.msra.mxu0 %v16
  %60 = vmatprep.subr.mxu0 0.0
  %61 = vmatpush1.msra.mxu0 %v15
  %62 = vmatprep.subr.mxu0 0.0
  %63 = vmatpush2.msra.mxu0 0.0
  %64 = vmatprep.subr.mxu0 0.0
  %65 = vmatpush2.msra.mxu0 0.0
  %66 = vmatprep.subr.mxu0 0.0
  %67 = vmatpush2.msra.mxu0 0.0
  %68 = vmatprep.subr.mxu0 0.0
  %69 = vmatpush2.msra.mxu0 0.0
  %70 = vmatprep.subr.mxu0 0.0
  %71 = vmatpush2.msra.mxu0 0.0
  %72 = vmatprep.subr.mxu0 0.0
  %73 = vmatpush2.msra.mxu0 0.0
  %74 = vmatprep.subr.mxu0 0.0
  %75 = vmatpush2.msra.mxu0 0.0
  %76 = vmatprep.subr.mxu0 0.0
  %77 = vmatpush2.msra.mxu0 0.0
  %78 = vmatprep.subr.mxu0 0.0
  %79 = vmatpush2.msra.mxu0 0.0
  %80 = vmatprep.subr.mxu0 0.0
  %81 = vmatpush2.msra.mxu0 0.0
  %82 = vmatprep.subr.mxu0 0.0
  %83 = vmatpush2.msra.mxu0 0.0
  %84 = vmatprep.subr.mxu0 0.0
  %85 = vmatpush2.msra.mxu0 0.0
  %86 = vmatprep.subr.mxu0 0.0
  %87 = vmatpush2.msra.mxu0 0.0
  %88 = vmatprep.subr.mxu0 0.0
  %89 = vmatpush2.msra.mxu0 0.0
  %90 = vmatprep.subr.mxu0 0.0
  %91 = vmatpush2.msra.mxu0 0.0
  %92 = vmatprep.subr.mxu0 0.0
  %93 = vmatpush2.msra.mxu0 0.0
  %94 = vmatprep.mubr.f32.mxu0 0.0
  %95 = vmatmul.mubr.f32.gmra.mxu0 %v28
  %v96 = vpop.f32.mrf.mxu0
  %v97 = vadd.f32 %v24, %v96
  %v98 = vpop.f32.mrf.mxu0
  %99 = vdwg.mxu0
  %vm100 = vcmask 31744
  %101 = vst.msk [vmem:[%s3] sm:$0xff] %vm100, %v97
  // Predicated region
  $region14: #{tpu_custom_call.1} parent=0 // pred_check
    _
  $region15: #{tpu_custom_call.1} parent=0 // pred_check_branch
    %103 = sbr.rel (0) target = $region17
  $region16: #{tpu_custom_call.1} parent=0 // pred_region
    _
  $region17: #{tpu_custom_call.1} parent=0 // pred_fallthru
    _
  // Predicated region
  $region18: #{tpu_custom_call.1} parent=0 // pred_check
    _
  $region19: #{tpu_custom_call.1} parent=0 // pred_check_branch
    %105 = sbr.rel (0) target = $region21
  $region20: #{tpu_custom_call.1} parent=0 // pred_region
    _
  $region21: #{tpu_custom_call.1} parent=0 // pred_fallthru
    _

</llo_original>
